<compile_context>
chip_gen: v7x
topology: tpu7x:2x2x1
jax: 0.10.0
libtpu: 0.0.40
codegen_flags: <defaults>
</compile_context>

<pallas_src>
import jax
import jax.numpy as jnp
from jax.experimental import pallas as pl
from jax.experimental.pallas import tpu as pltpu


def custom_odefunc_kernel(adjI_ref, alpha_ref, x_ref, x0_ref, o_ref):
    """One grid step = one lane-tile of the [N, B*D] slab.

    f = (leaky_relu(alpha) * 0.6)[:, None] * ((adj - I) @ X) + X0
    """
    a = alpha_ref[...].astype(jnp.float32)                 # [N, 1]
    alph06 = jnp.where(a >= 0, a, 0.01 * a) * 0.6          # leaky_relu * 0.6, once

    # MXU: [N, N] @ [N, lane_tile], f32 accumulate.  (adj - I) @ x == A@x - x.
    ax_minus_x = jnp.dot(adjI_ref[...].astype(jnp.float32),
                         x_ref[...].astype(jnp.float32),
                         preferred_element_type=jnp.float32)

    f = alph06 * ax_minus_x + x0_ref[...].astype(jnp.float32)   # VPU, [N,1] bcast
    o_ref[...] = f.astype(o_ref.dtype)


def custom_odefunc_forward(adj_minus_I, alpha_train, x, x0, t=0.0):
    """Equivalent of Custom_ODEFunc.forward(t, x) with self.x0 = x0.

    adj_minus_I is the statically precomputed (adj - I) buffer (built once
    where adj is built).  x / x0 may be [N, D] (single state, like the
    PyTorch module) or [B, N, D] (a batch of independent states evaluated in
    one pallas_call — the batch is folded into the matmul's lane dimension).
    """
    del t  # the ODE is autonomous; the module ignores t too

    squeeze = (x.ndim == 2)
    if squeeze:
        x, x0 = x[None], x0[None]
    B, N, D = x.shape
    alpha2d = alpha_train.reshape(N, 1)

    # One-time layout plumbing: [B, N, D] -> lane-concatenated [N, B*D].
    lanes = B * D
    x_cat = jnp.transpose(x, (1, 0, 2)).reshape(N, lanes)
    x0_cat = jnp.transpose(x0, (1, 0, 2)).reshape(N, lanes)

    # 2 lane-tiles (256 lanes each here) -> shards across both v7x TCs and
    # keeps each step's matmul RHS >= the 256-wide MXU; no-op cost on v5e/v6e.
    n_tiles = 2 if (lanes % 256 == 0) else 1
    lane_tile = lanes // n_tiles

    out_cat = pl.pallas_call(
        custom_odefunc_kernel,
        out_shape=jax.ShapeDtypeStruct((N, lanes), x.dtype),
        grid_spec=pltpu.PrefetchScalarGridSpec(
            num_scalar_prefetch=0,
            grid=(n_tiles,),
            in_specs=[
                # Grid-invariant blocks: stay resident, single-buffered.
                pl.BlockSpec((N, N), lambda j: (0, 0),
                             pipeline_mode=pl.Buffered(1)),
                pl.BlockSpec((N, 1), lambda j: (0, 0),
                             pipeline_mode=pl.Buffered(1)),
                # Per-tile state blocks (default double-buffered pipeline).
                pl.BlockSpec((N, lane_tile), lambda j: (0, j)),
                pl.BlockSpec((N, lane_tile), lambda j: (0, j)),
            ],
            out_specs=pl.BlockSpec((N, lane_tile), lambda j: (0, j)),
        ),
        # Independent lane tiles -> shard grid across both v7x TensorCores.
        compiler_params=pltpu.CompilerParams(
            dimension_semantics=("parallel",)),
    )(adj_minus_I, alpha2d, x_cat, x0_cat)

    out = out_cat.reshape(N, B, D).transpose(1, 0, 2)
    return out[0] if squeeze else out


def _reference(adj, alpha_train, x, x0):
    """Pure-JAX equivalent of the PyTorch forward (dense spmm, original adj)."""
    alph = jnp.where(alpha_train >= 0, alpha_train, 0.01 * alpha_train)[:, None]
    ax = jnp.einsum("nm,bmd->bnd", adj, x)
    return alph * 0.6 * (ax - x) + x0


if __name__ == "__main__":
    key = jax.random.PRNGKey(0)
    k_adj, k_alpha, k_x, k_x0 = jax.random.split(key, 4)

    B, N, D = 4, 128, 128   # batch of states, nodes, hidden_dim (lane-dense)

    # Row-normalized random adjacency with self-loops (dense stand-in for the
    # sparse `adj` buffer of the module).
    raw = jax.random.uniform(k_adj, (N, N), dtype=jnp.float32)
    mask = (raw > 0.9).astype(jnp.float32) + jnp.eye(N, dtype=jnp.float32)
    adj = mask / jnp.sum(mask, axis=1, keepdims=True)

    # Static preprocessing, done once where adj is built: fold "- x" into A.
    adj_minus_I = adj - jnp.eye(N, dtype=adj.dtype)

    # alpha_train init is opt['alpha'] * ones(N); perturb so leaky_relu's
    # negative branch is exercised (as it would be after training).
    opt_alpha = 1.0
    alpha_train = (opt_alpha * jnp.ones((N,), jnp.float32)
                   + 1.5 * jax.random.normal(k_alpha, (N,), jnp.float32))

    x = jax.random.normal(k_x, (B, N, D), dtype=jnp.float32)
    x0 = jax.random.normal(k_x0, (B, N, D), dtype=jnp.float32)  # self.x0 buffer

    out = custom_odefunc_forward(adj_minus_I, alpha_train, x, x0)
    jax.block_until_ready(out)

    ref = _reference(adj, alpha_train, x, x0)
    assert out.shape == (B, N, D)
    assert jnp.allclose(out, ref, atol=1e-4, rtol=1e-4), \
        float(jnp.max(jnp.abs(out - ref)))

    print("KERNEL_OK")
</pallas_src>

<mosaic_0001>
module attributes {stable_mosaic.version = 11 : i64} {
  func.func @custom_odefunc_kernel(%arg0: i32, %arg1: memref<128x128xf32, #tpu.memory_space<vmem>>, %arg2: memref<128x1xf32, #tpu.memory_space<vmem>>, %arg3: memref<128x256xf32, #tpu.memory_space<vmem>>, %arg4: memref<128x256xf32, #tpu.memory_space<vmem>>, %arg5: memref<128x256xf32, #tpu.memory_space<vmem>>) attributes {dimension_semantics = [#tpu.dimension_semantics<parallel>], iteration_bounds = array<i64: 2>, scalar_prefetch = 0 : i64, scratch_operands = 0 : i64, tpu.core_type = #tpu.core_type<tc>, window_params = [{pipeline_mode = #tpu.pipeline_mode<synchronous>, transform_indices = @transform_0, window_bounds = array<i64: 128, 128>}, {pipeline_mode = #tpu.pipeline_mode<synchronous>, transform_indices = @transform_1, window_bounds = array<i64: 128, 1>}, {transform_indices = @transform_2, window_bounds = array<i64: 128, 256>}, {transform_indices = @transform_3, window_bounds = array<i64: 128, 256>}, {transform_indices = @transform_4, window_bounds = array<i64: 128, 256>}]} {
    %c0 = arith.constant 0 : index
    %c0_0 = arith.constant 0 : index
    %0 = vector.load %arg2[%c0, %c0_0] : memref<128x1xf32, #tpu.memory_space<vmem>>, vector<128x1xf32>
    %cst = arith.constant 0.000000e+00 : f32
    %1 = vector.broadcast %cst : f32 to vector<128x1xf32>
    %2 = arith.cmpf oge, %0, %1 : vector<128x1xf32>
    %cst_1 = arith.constant 0.00999999977 : f32
    %3 = vector.broadcast %cst_1 : f32 to vector<128x1xf32>
    %4 = arith.mulf %3, %0 : vector<128x1xf32>
    %5 = arith.select %2, %0, %4 : vector<128x1xi1>, vector<128x1xf32>
    %cst_2 = arith.constant 6.000000e-01 : f32
    %6 = vector.broadcast %cst_2 : f32 to vector<128x1xf32>
    %7 = arith.mulf %5, %6 : vector<128x1xf32>
    %c0_3 = arith.constant 0 : index
    %c0_4 = arith.constant 0 : index
    %8 = vector.load %arg1[%c0_3, %c0_4] : memref<128x128xf32, #tpu.memory_space<vmem>>, vector<128x128xf32>
    %c0_5 = arith.constant 0 : index
    %c0_6 = arith.constant 0 : index
    %9 = vector.load %arg3[%c0_5, %c0_6] : memref<128x256xf32, #tpu.memory_space<vmem>>, vector<128x256xf32>
    %cst_7 = arith.constant dense<0.000000e+00> : vector<128x256xf32>
    %10 = tpu.matmul %8, %9, %cst_7 {dimension_numbers = #tpu.dot_dimension_numbers<[1], [0], [0], [1], [0, 0, 1, 1], [], []>} : vector<128x128xf32>, vector<128x256xf32>, vector<128x256xf32> -> vector<128x256xf32>
    %11 = vector.broadcast %7 : vector<128x1xf32> to vector<128x256xf32>
    %12 = arith.mulf %11, %10 : vector<128x256xf32>
    %c0_8 = arith.constant 0 : index
    %c0_9 = arith.constant 0 : index
    %13 = vector.load %arg4[%c0_8, %c0_9] : memref<128x256xf32, #tpu.memory_space<vmem>>, vector<128x256xf32>
    %14 = arith.addf %12, %13 : vector<128x256xf32>
    %c0_10 = arith.constant 0 : index
    %c0_11 = arith.constant 0 : index
    %15 = vector.load %arg5[%c0_10, %c0_11] : memref<128x256xf32, #tpu.memory_space<vmem>>, vector<128x256xf32>
    tpu.vector_store %arg5[%c0_10, %c0_11], %14 {strides = array<i32>} : memref<128x256xf32, #tpu.memory_space<vmem>>, vector<128x256xf32>,
    return
  }
  func.func @transform_0(%arg0: i32) -> (i32, i32) {
    %c0_i32 = arith.constant 0 : i32
    %c0_i32_0 = arith.constant 0 : i32
    %c0_i32_1 = arith.constant 0 : i32
    return %c0_i32, %c0_i32_0 : i32, i32
  }
  func.func @transform_1(%arg0: i32) -> (i32, i32) {
    %c0_i32 = arith.constant 0 : i32
    %c0_i32_0 = arith.constant 0 : i32
    %c0_i32_1 = arith.constant 0 : i32
    return %c0_i32, %c0_i32_0 : i32, i32
  }
  func.func @transform_2(%arg0: i32) -> (i32, i32) {
    %c0_i32 = arith.constant 0 : i32
    %c0_i32_0 = arith.constant 0 : i32
    return %c0_i32, %arg0 : i32, i32
  }
  func.func @transform_3(%arg0: i32) -> (i32, i32) {
    %c0_i32 = arith.constant 0 : i32
    %c0_i32_0 = arith.constant 0 : i32
    return %c0_i32, %arg0 : i32, i32
  }
  func.func @transform_4(%arg0: i32) -> (i32, i32) {
    %c0_i32 = arith.constant 0 : i32
    %c0_i32_0 = arith.constant 0 : i32
    return %c0_i32, %arg0 : i32, i32
  }
}

</mosaic_0001>

<llo_original>
// kernel: tpu_custom_call.1
$region0: #{tpu_custom_call.1}
  #allocation0 [shape = 'u32[]', space=smem, size = 0x4, offset = 0x4, fixed_abs, tag = 'smem constant byte address 0x4 - core index']
  #allocation1 [shape = 'u32[144,128]{1,0:T(1,128)}', space=vmem, size = 0x12000, scoped, tag = 'internal scratch']
  %s0 = inlined_call_operand.vmem [shape: f32[128,128], index: 0, kind: input, shape index: {}]
  %s1 = inlined_call_operand.vmem [shape: f32[128,1], index: 1, kind: input, shape index: {}]
  %s2 = inlined_call_operand.hbm [shape: f32[128,512], index: 2, kind: input, shape index: {}]
  %s3 = inlined_call_operand.hbm [shape: f32[128,512], index: 3, kind: input, shape index: {}]
  %s4 = inlined_call_operand.hbm [shape: f32[128,512], index: 4, kind: output, shape index: {}]
  %s5 = sld [smem:[#allocation0]]
  $region57: #{tpu_custom_call.1} parent=0
    _
  %s7 = ssub.s32 1, %s5
  %s8 = scalar_select 0, %s7, %s5
  $region1: #{tpu_custom_call.1} parent=0
    #allocation2 [shape = 'u8[262144]{0}', space=vmem, size = 0x40000, scoped, tag = 'input window, operand 2']
    #allocation3 [shape = 's32[2]{0}', space=sflag, size = 0x8, scoped, tag = 'scoped memory for tpu_custom_call.1']
    #allocation4 [shape = 's32[2]{0}', space=sflag, size = 0x8, scoped, tag = 'scoped memory for tpu_custom_call.1']
    #allocation5 [shape = 'u8[262144]{0}', space=vmem, size = 0x40000, scoped, tag = 'input window, operand 3']
    #allocation6 [shape = 's32[2]{0}', space=sflag, size = 0x8, scoped, tag = 'scoped memory for tpu_custom_call.1']
    #allocation7 [shape = 'u8[262144]{0}', space=vmem, size = 0x40000, scoped, tag = 'output window, operand 0']
    %9 = vsyncpa [#allocation3], 0
    %s10 = scalar_lea.sflag [#allocation3], 1
    %11 = vsyncpa %s10, 0
    %12 = vsyncpa [#allocation6], 0
    %s13 = scalar_lea.sflag [#allocation6], 1
    %14 = vsyncpa %s13, 0
    %15 = vsyncpa [#allocation4], 0
    %s16 = scalar_lea.sflag [#allocation4], 1
    %17 = vsyncpa %s16, 0
    loop: start=0, step=1, limit=4
    $region2: #{tpu_custom_call.1} parent=1 // loop_pre_header
      _
    $region3: #{tpu_custom_call.1} parent=1 // loop_header
      %s19 = sphi 0, %s23
      %p20 = scmp.ge.s32.totalorder %s19, 4
      %s27 = sphi 0, %s27
      %s29 = sphi 0, %s27
      %s30 = sphi 0, %s29
      %s44 = sphi 0, %s30
      %s48 = sphi 0, %s48
      %s50 = sphi 0, %s48
      %s51 = sphi 0, %s50
      %s65 = sphi 0, %s51
      %s71 = sphi 0, %s73
      %s74 = sphi 0, %s71
      %s75 = sphi 0, %s74
      %s91 = sphi 0, %s75
      %s97 = sphi 0, %s99
      %s100 = sphi 0, %s97
      %s101 = sphi 0, %s100
      %s117 = sphi 0, %s101
      %s123 = sphi 0, %s125
      %s126 = sphi 0, %s123
      %s127 = sphi 0, %s126
      %s143 = sphi 0, %s127
    $region4: #{tpu_custom_call.1} parent=1 // loop_header_branch
      %22 = sbr.rel (%p20) target = $region8
    $region5: #{tpu_custom_call.1} parent=1 // loop_body
      %s24 = ssub.s32 %s19, 1
      %s25 = ssub.s32 %s19, 2
      %s26 = sadd.s32 %s19, 1
      %s28 = sadd.s32 %s27, 1
      %p31 = scmp.eq.s32.totalorder %s19, 1
      %p32 = scmp.ne.s32.totalorder %s27, %s29
      %p33 = scmp.eq.s32.totalorder %s19, 0
      %p34 = por %p32, %p33
      %p35 = scmp.ne.s32.totalorder %s27, %s29
      %p36 = scmp.eq.s32.totalorder %s24, 1
      %p37 = por %p35, %p36
      %p38 = scmp.ne.s32.totalorder %s29, %s30
      %p39 = scmp.eq.s32.totalorder %s24, 0
      %p40 = por %p38, %p39
      %p41 = scmp.ne.s32.totalorder %s29, %s30
      %p42 = scmp.eq.s32.totalorder %s25, 1
      %p43 = por %p41, %p42
      %p45 = scmp.ne.s32.totalorder %s30, %s44
      %p46 = scmp.eq.s32.totalorder %s25, 0
      %p47 = por %p45, %p46
      %s49 = sadd.s32 %s48, 1
      %p52 = scmp.eq.s32.totalorder %s19, 1
      %p53 = scmp.ne.s32.totalorder %s48, %s50
      %p54 = scmp.eq.s32.totalorder %s19, 0
      %p55 = por %p53, %p54
      %p56 = scmp.ne.s32.totalorder %s48, %s50
      %p57 = scmp.eq.s32.totalorder %s24, 1
      %p58 = por %p56, %p57
      %p59 = scmp.ne.s32.totalorder %s50, %s51
      %p60 = scmp.eq.s32.totalorder %s24, 0
      %p61 = por %p59, %p60
      %p62 = scmp.ne.s32.totalorder %s50, %s51
      %p63 = scmp.eq.s32.totalorder %s25, 1
      %p64 = por %p62, %p63
      %p66 = scmp.ne.s32.totalorder %s51, %s65
      %p67 = scmp.eq.s32.totalorder %s25, 0
      %p68 = por %p66, %p67
      %s69 = ssub.s32 %s19, %s26
      %p70 = scmp.eq.s32.totalorder %s69, 0
      %s72 = sadd.s32 %s71, 1
      %s73 = scalar_select %p70, %s71, %s72
      %p76 = pneg %p70
      %p77 = scmp.eq.s32.totalorder %s19, 1
      %p78 = por %p76, %p77
      %p79 = scmp.ne.s32.totalorder %s71, %s74
      %p80 = scmp.eq.s32.totalorder %s19, 0
      %p81 = por %p79, %p80
      %p82 = scmp.ne.s32.totalorder %s71, %s74
      %p83 = scmp.eq.s32.totalorder %s24, 1
      %p84 = por %p82, %p83
      %p85 = scmp.ne.s32.totalorder %s74, %s75
      %p86 = scmp.eq.s32.totalorder %s24, 0
      %p87 = por %p85, %p86
      %p88 = scmp.ne.s32.totalorder %s74, %s75
      %p89 = scmp.eq.s32.totalorder %s25, 1
      %p90 = por %p88, %p89
      %p92 = scmp.ne.s32.totalorder %s75, %s91
      %p93 = scmp.eq.s32.totalorder %s25, 0
      %p94 = por %p92, %p93
      %s95 = ssub.s32 %s19, %s26
      %p96 = scmp.eq.s32.totalorder %s95, 0
      %s98 = sadd.s32 %s97, 1
      %s99 = scalar_select %p96, %s97, %s98
      %p102 = pneg %p96
      %p103 = scmp.eq.s32.totalorder %s19, 1
      %p104 = por %p102, %p103
      %p105 = scmp.ne.s32.totalorder %s97, %s100
      %p106 = scmp.eq.s32.totalorder %s19, 0
      %p107 = por %p105, %p106
      %p108 = scmp.ne.s32.totalorder %s97, %s100
      %p109 = scmp.eq.s32.totalorder %s24, 1
      %p110 = por %p108, %p109
      %p111 = scmp.ne.s32.totalorder %s100, %s101
      %p112 = scmp.eq.s32.totalorder %s24, 0
      %p113 = por %p111, %p112
      %p114 = scmp.ne.s32.totalorder %s100, %s101
      %p115 = scmp.eq.s32.totalorder %s25, 1
      %p116 = por %p114, %p115
      %p118 = scmp.ne.s32.totalorder %s101, %s117
      %p119 = scmp.eq.s32.totalorder %s25, 0
      %p120 = por %p118, %p119
      %s121 = ssub.s32 %s19, %s26
      %p122 = scmp.eq.s32.totalorder %s121, 0
      %s124 = sadd.s32 %s123, 1
      %s125 = scalar_select %p122, %s123, %s124
      %p128 = pneg %p122
      %p129 = scmp.eq.s32.totalorder %s19, 1
      %p130 = por %p128, %p129
      %p131 = scmp.ne.s32.totalorder %s123, %s126
      %p132 = scmp.eq.s32.totalorder %s19, 0
      %p133 = por %p131, %p132
      %p134 = scmp.ne.s32.totalorder %s123, %s126
      %p135 = scmp.eq.s32.totalorder %s24, 1
      %p136 = por %p134, %p135
      %p137 = scmp.ne.s32.totalorder %s126, %s127
      %p138 = scmp.eq.s32.totalorder %s24, 0
      %p139 = por %p137, %p138
      %p140 = scmp.ne.s32.totalorder %s126, %s127
      %p141 = scmp.eq.s32.totalorder %s25, 1
      %p142 = por %p140, %p141
      %p144 = scmp.ne.s32.totalorder %s127, %s143
      %p145 = scmp.eq.s32.totalorder %s25, 0
      %p146 = por %p144, %p145
      %p147 = scmp.le.s32.totalorder 1, %s19
      %p148 = scmp.lt.s32.totalorder %s19, 3
      %p149 = pnand %p147, %p148
      %p150 = pneg %p149
      // Predicated region
      $region9: #{tpu_custom_call.1} parent=5 // pred_check
        _
      $region10: #{tpu_custom_call.1} parent=5 // pred_check_branch
        %152 = sbr.rel (%p149) target = $region12
      $region11: #{tpu_custom_call.1} parent=5 // pred_region
        %s153 = ssub.s32 %s19, 1
        // Predicated region
        $region13: #{tpu_custom_call.1} parent=11 // pred_check
          %p154 = pneg %p40
        $region14: #{tpu_custom_call.1} parent=11 // pred_check_branch
          %156 = sbr.rel (%p154) target = $region16
        $region15: #{tpu_custom_call.1} parent=11 // pred_region
          _
        $region16: #{tpu_custom_call.1} parent=11 // pred_fallthru
          _
        // Predicated region
        $region17: #{tpu_custom_call.1} parent=11 // pred_check
          %p157 = pneg %p61
        $region18: #{tpu_custom_call.1} parent=11 // pred_check_branch
          %159 = sbr.rel (%p157) target = $region20
        $region19: #{tpu_custom_call.1} parent=11 // pred_region
          _
        $region20: #{tpu_custom_call.1} parent=11 // pred_fallthru
          _
      $region12: #{tpu_custom_call.1} parent=5 // pred_fallthru
        _
      %p160 = scmp.lt.s32.totalorder %s19, 2
      // Predicated region
      $region21: #{tpu_custom_call.1} parent=5 // pred_check
        %p161 = pneg %p160
      $region22: #{tpu_custom_call.1} parent=5 // pred_check_branch
        %163 = sbr.rel (%p161) target = $region24
      $region23: #{tpu_custom_call.1} parent=5 // pred_region
        // Predicated region
        $region25: #{tpu_custom_call.1} parent=23 // pred_check
          %p164 = pneg %p81
        $region26: #{tpu_custom_call.1} parent=23 // pred_check_branch
          %166 = sbr.rel (%p164) target = $region28
        $region27: #{tpu_custom_call.1} parent=23 // pred_region
          %s167 = sand.u32 %s71, 1
          %s168 = scalar_lea.sflag [#allocation3], %s167
          %s169 = sand.u32 %s71, 1
          %s170 = smul.addr %s169, 256
          %s171 = scalar_lea.vmem [#allocation2], %s170
          %s172 = smul.u32 2, %s19
          %s174 = ssub.s32 4096, 4096
          %175 = vsyncadd %s168, %s174
          %s176 = smul.addr %s172, 128
          %s177 = scalar_lea.hbm %s2, %s176
          %s178 = sshll.u32 %s171, 4
          %s179 = int_to_ptr.vmem [resolvable:$true] %s178
          %184 = dma.hbm_to_vmem [thread:$0]  %s177, 4096, %s179, %s168, 512, 256, 16
        $region28: #{tpu_custom_call.1} parent=23 // pred_fallthru
          _
        // Predicated region
        $region29: #{tpu_custom_call.1} parent=23 // pred_check
          %p185 = pneg %p107
        $region30: #{tpu_custom_call.1} parent=23 // pred_check_branch
          %187 = sbr.rel (%p185) target = $region32
        $region31: #{tpu_custom_call.1} parent=23 // pred_region
          %s188 = sand.u32 %s97, 1
          %s189 = scalar_lea.sflag [#allocation6], %s188
          %s190 = sand.u32 %s97, 1
          %s191 = smul.addr %s190, 256
          %s192 = scalar_lea.vmem [#allocation5], %s191
          %s193 = smul.u32 2, %s19
          %s195 = ssub.s32 4096, 4096
          %196 = vsyncadd %s189, %s195
          %s197 = smul.addr %s193, 128
          %s198 = scalar_lea.hbm %s3, %s197
          %s199 = sshll.u32 %s192, 4
          %s200 = int_to_ptr.vmem [resolvable:$true] %s199
          %205 = dma.hbm_to_vmem [thread:$0]  %s198, 4096, %s200, %s189, 512, 256, 16
        $region32: #{tpu_custom_call.1} parent=23 // pred_fallthru
          _
      $region24: #{tpu_custom_call.1} parent=5 // pred_fallthru
        _
      %p206 = scmp.le.s32.totalorder 1, %s19
      %p207 = scmp.lt.s32.totalorder %s19, 3
      %p208 = pnand %p206, %p207
      %p209 = pneg %p208
      // Predicated region
      $region33: #{tpu_custom_call.1} parent=5 // pred_check
        _
      $region34: #{tpu_custom_call.1} parent=5 // pred_check_branch
        %211 = sbr.rel (%p208) target = $region36
      $region35: #{tpu_custom_call.1} parent=5 // pred_region
        %s212 = ssub.s32 %s19, 1
        %s213 = sand.u32 %s74, 1
        %s214 = scalar_lea.sflag [#allocation3], %s213
        %s215 = sand.u32 %s74, 1
        %s216 = smul.addr %s215, 256
        %s217 = scalar_lea.vmem [#allocation2], %s216
        // Predicated region
        $region37: #{tpu_custom_call.1} parent=35 // pred_check
          %p218 = pneg %p87
        $region38: #{tpu_custom_call.1} parent=35 // pred_check_branch
          %220 = sbr.rel (%p218) target = $region40
        $region39: #{tpu_custom_call.1} parent=35 // pred_region
          %221 = dma.done %s214, 4096
        $region40: #{tpu_custom_call.1} parent=35 // pred_fallthru
          _
        %s222 = sand.u32 %s100, 1
        %s223 = scalar_lea.sflag [#allocation6], %s222
        %s224 = sand.u32 %s100, 1
        %s225 = smul.addr %s224, 256
        %s226 = scalar_lea.vmem [#allocation5], %s225
        // Predicated region
        $region41: #{tpu_custom_call.1} parent=35 // pred_check
          %p227 = pneg %p113
        $region42: #{tpu_custom_call.1} parent=35 // pred_check_branch
          %229 = sbr.rel (%p227) target = $region44
        $region43: #{tpu_custom_call.1} parent=35 // pred_region
          %230 = dma.done %s223, 4096
        $region44: #{tpu_custom_call.1} parent=35 // pred_fallthru
          _
        %p231 = pneg %p40
        %p232 = pneg %p37
        %p233 = pneg %p61
        %p234 = pneg %p58
        %s235 = sand.u32 %s74, 1
        %s236 = scalar_lea.sflag [#allocation3], %s235
        %s237 = sand.u32 %s74, 1
        %s238 = smul.addr %s237, 256
        %s239 = scalar_lea.vmem [#allocation2], %s238
        %p240 = pneg %p87
        %p241 = pneg %p84
        %s242 = sand.u32 %s100, 1
        %s243 = scalar_lea.sflag [#allocation6], %s242
        %s244 = sand.u32 %s100, 1
        %s245 = smul.addr %s244, 256
        %s246 = scalar_lea.vmem [#allocation5], %s245
        %p247 = pneg %p113
        %p248 = pneg %p110
        %p249 = pneg %p139
        %p250 = pneg %p136
        %s251 = sand.u32 %s126, 1
        %s252 = scalar_lea.sflag [#allocation4], %s251
        %s253 = sand.u32 %s126, 1
        %s254 = smul.addr %s253, 256
        %s255 = scalar_lea.vmem [#allocation7], %s254
        %s256 = smul.u32 2, %s24
        %s257 = smul.u32 2, %s24
        %s258 = smul.u32 2, %s24
        %v259 = vld [vmem:[%s1] sm:$0xff]
        %v260 = vld [vmem:[%s1 + $0x8] sm:$0xff]
        %v261 = vld [vmem:[%s1 + $0x10] sm:$0xff]
        %v262 = vld [vmem:[%s1 + $0x18] sm:$0xff]
        %v263 = vld [vmem:[%s1 + $0x20] sm:$0xff]
        %v264 = vld [vmem:[%s1 + $0x28] sm:$0xff]
        %v265 = vld [vmem:[%s1 + $0x30] sm:$0xff]
        %v266 = vld [vmem:[%s1 + $0x38] sm:$0xff]
        %v267 = vld [vmem:[%s1 + $0x40] sm:$0xff]
        %v268 = vld [vmem:[%s1 + $0x48] sm:$0xff]
        %v269 = vld [vmem:[%s1 + $0x50] sm:$0xff]
        %v270 = vld [vmem:[%s1 + $0x58] sm:$0xff]
        %v271 = vld [vmem:[%s1 + $0x60] sm:$0xff]
        %v272 = vld [vmem:[%s1 + $0x68] sm:$0xff]
        %v273 = vld [vmem:[%s1 + $0x70] sm:$0xff]
        %v274 = vld [vmem:[%s1 + $0x78] sm:$0xff]
        %vm275 = vcmp.ge.f32.partialorder %v259, 0.0
        %vm276 = vcmp.ge.f32.partialorder %v260, 0.0
        %vm277 = vcmp.ge.f32.partialorder %v261, 0.0
        %vm278 = vcmp.ge.f32.partialorder %v262, 0.0
        %vm279 = vcmp.ge.f32.partialorder %v263, 0.0
        %vm280 = vcmp.ge.f32.partialorder %v264, 0.0
        %vm281 = vcmp.ge.f32.partialorder %v265, 0.0
        %vm282 = vcmp.ge.f32.partialorder %v266, 0.0
        %vm283 = vcmp.ge.f32.partialorder %v267, 0.0
        %vm284 = vcmp.ge.f32.partialorder %v268, 0.0
        %vm285 = vcmp.ge.f32.partialorder %v269, 0.0
        %vm286 = vcmp.ge.f32.partialorder %v270, 0.0
        %vm287 = vcmp.ge.f32.partialorder %v271, 0.0
        %vm288 = vcmp.ge.f32.partialorder %v272, 0.0
        %vm289 = vcmp.ge.f32.partialorder %v273, 0.0
        %vm290 = vcmp.ge.f32.partialorder %v274, 0.0
        %v291 = vmul.f32 %v259, 0.01
        %v292 = vmul.f32 %v260, 0.01
        %v293 = vmul.f32 %v261, 0.01
        %v294 = vmul.f32 %v262, 0.01
        %v295 = vmul.f32 %v263, 0.01
        %v296 = vmul.f32 %v264, 0.01
        %v297 = vmul.f32 %v265, 0.01
        %v298 = vmul.f32 %v266, 0.01
        %v299 = vmul.f32 %v267, 0.01
        %v300 = vmul.f32 %v268, 0.01
        %v301 = vmul.f32 %v269, 0.01
        %v302 = vmul.f32 %v270, 0.01
        %v303 = vmul.f32 %v271, 0.01
        %v304 = vmul.f32 %v272, 0.01
        %v305 = vmul.f32 %v273, 0.01
        %v306 = vmul.f32 %v274, 0.01
        %v307 = vsel %vm275, %v259, %v291
        %v308 = vsel %vm276, %v260, %v292
        %v309 = vsel %vm277, %v261, %v293
        %v310 = vsel %vm278, %v262, %v294
        %v311 = vsel %vm279, %v263, %v295
        %v312 = vsel %vm280, %v264, %v296
        %v313 = vsel %vm281, %v265, %v297
        %v314 = vsel %vm282, %v266, %v298
        %v315 = vsel %vm283, %v267, %v299
        %v316 = vsel %vm284, %v268, %v300
        %v317 = vsel %vm285, %v269, %v301
        %v318 = vsel %vm286, %v270, %v302
        %v319 = vsel %vm287, %v271, %v303
        %v320 = vsel %vm288, %v272, %v304
        %v321 = vsel %vm289, %v273, %v305
        %v322 = vsel %vm290, %v274, %v306
        %v323 = vmul.f32 %v307, 0.6
        %v324 = vmul.f32 %v308, 0.6
        %v325 = vmul.f32 %v309, 0.6
        %v326 = vmul.f32 %v310, 0.6
        %v327 = vmul.f32 %v311, 0.6
        %v328 = vmul.f32 %v312, 0.6
        %v329 = vmul.f32 %v313, 0.6
        %v330 = vmul.f32 %v314, 0.6
        %v331 = vmul.f32 %v315, 0.6
        %v332 = vmul.f32 %v316, 0.6
        %v333 = vmul.f32 %v317, 0.6
        %v334 = vmul.f32 %v318, 0.6
        %v335 = vmul.f32 %v319, 0.6
        %v336 = vmul.f32 %v320, 0.6
        %v337 = vmul.f32 %v321, 0.6
        %v338 = vmul.f32 %v322, 0.6
        %v339 = vld [vmem:[%s0] sm:$0xff]
        %v340 = vld [vmem:[%s0 + $0x8] sm:$0xff]
        %v341 = vld [vmem:[%s0 + $0x10] sm:$0xff]
        %v342 = vld [vmem:[%s0 + $0x18] sm:$0xff]
        %v343 = vld [vmem:[%s0 + $0x20] sm:$0xff]
        %v344 = vld [vmem:[%s0 + $0x28] sm:$0xff]
        %v345 = vld [vmem:[%s0 + $0x30] sm:$0xff]
        %v346 = vld [vmem:[%s0 + $0x38] sm:$0xff]
        %v347 = vld [vmem:[%s0 + $0x40] sm:$0xff]
        %v348 = vld [vmem:[%s0 + $0x48] sm:$0xff]
        %v349 = vld [vmem:[%s0 + $0x50] sm:$0xff]
        %v350 = vld [vmem:[%s0 + $0x58] sm:$0xff]
        %v351 = vld [vmem:[%s0 + $0x60] sm:$0xff]
        %v352 = vld [vmem:[%s0 + $0x68] sm:$0xff]
        %v353 = vld [vmem:[%s0 + $0x70] sm:$0xff]
        %v354 = vld [vmem:[%s0 + $0x78] sm:$0xff]
        %v355 = vld [vmem:[%s217] sm:$0xff]
        %v356 = vld [vmem:[%s217 + $0x8] sm:$0xff]
        %v357 = vld [vmem:[%s217 + $0x10] sm:$0xff]
        %v358 = vld [vmem:[%s217 + $0x18] sm:$0xff]
        %v359 = vld [vmem:[%s217 + $0x20] sm:$0xff]
        %v360 = vld [vmem:[%s217 + $0x28] sm:$0xff]
        %v361 = vld [vmem:[%s217 + $0x30] sm:$0xff]
        %v362 = vld [vmem:[%s217 + $0x38] sm:$0xff]
        %v363 = vld [vmem:[%s217 + $0x40] sm:$0xff]
        %v364 = vld [vmem:[%s217 + $0x48] sm:$0xff]
        %v365 = vld [vmem:[%s217 + $0x50] sm:$0xff]
        %v366 = vld [vmem:[%s217 + $0x58] sm:$0xff]
        %v367 = vld [vmem:[%s217 + $0x60] sm:$0xff]
        %v368 = vld [vmem:[%s217 + $0x68] sm:$0xff]
        %v369 = vld [vmem:[%s217 + $0x70] sm:$0xff]
        %v370 = vld [vmem:[%s217 + $0x78] sm:$0xff]
        %v371 = vld [vmem:[%s217 + $0x80] sm:$0xff]
        %v372 = vld [vmem:[%s217 + $0x88] sm:$0xff]
        %v373 = vld [vmem:[%s217 + $0x90] sm:$0xff]
        %v374 = vld [vmem:[%s217 + $0x98] sm:$0xff]
        %v375 = vld [vmem:[%s217 + $0xa0] sm:$0xff]
        %v376 = vld [vmem:[%s217 + $0xa8] sm:$0xff]
        %v377 = vld [vmem:[%s217 + $0xb0] sm:$0xff]
        %v378 = vld [vmem:[%s217 + $0xb8] sm:$0xff]
        %v379 = vld [vmem:[%s217 + $0xc0] sm:$0xff]
        %v380 = vld [vmem:[%s217 + $0xc8] sm:$0xff]
        %v381 = vld [vmem:[%s217 + $0xd0] sm:$0xff]
        %v382 = vld [vmem:[%s217 + $0xd8] sm:$0xff]
        %v383 = vld [vmem:[%s217 + $0xe0] sm:$0xff]
        %v384 = vld [vmem:[%s217 + $0xe8] sm:$0xff]
        %v385 = vld [vmem:[%s217 + $0xf0] sm:$0xff]
        %v386 = vld [vmem:[%s217 + $0xf8] sm:$0xff]
        %387 = vmatprep.subr.mxu0 %v356
        %388 = vmatpush1.msra.mxu0 %v355
        %389 = vmatprep.subr.mxu0 %v358
        %390 = vmatpush1.msra.mxu0 %v357
        %391 = vmatprep.subr.mxu0 %v360
        %392 = vmatpush1.msra.mxu0 %v359
        %393 = vmatprep.subr.mxu0 %v362
        %394 = vmatpush1.msra.mxu0 %v361
        %395 = vmatprep.subr.mxu0 %v364
        %396 = vmatpush1.msra.mxu0 %v363
        %397 = vmatprep.subr.mxu0 %v366
        %398 = vmatpush1.msra.mxu0 %v365
        %399 = vmatprep.subr.mxu0 %v368
        %400 = vmatpush1.msra.mxu0 %v367
        %401 = vmatprep.subr.mxu0 %v370
        %402 = vmatpush1.msra.mxu0 %v369
        %403 = vmatprep.subr.mxu0 %v372
        %404 = vmatpush1.msra.mxu0 %v371
        %405 = vmatprep.subr.mxu0 %v374
        %406 = vmatpush1.msra.mxu0 %v373
        %407 = vmatprep.subr.mxu0 %v376
        %408 = vmatpush1.msra.mxu0 %v375
        %409 = vmatprep.subr.mxu0 %v378
        %410 = vmatpush1.msra.mxu0 %v377
        %411 = vmatprep.subr.mxu0 %v380
        %412 = vmatpush1.msra.mxu0 %v379
        %413 = vmatprep.subr.mxu0 %v382
        %414 = vmatpush1.msra.mxu0 %v381
        %415 = vmatprep.subr.mxu0 %v384
        %416 = vmatpush1.msra.mxu0 %v383
        %417 = vmatprep.subr.mxu0 %v386
        %418 = vmatpush1.msra.mxu0 %v385
        %419 = vmatprep.subr.mxu0 0.0
        %420 = vmatpush1.msra.mxu0 0.0
        %421 = vmatprep.subr.mxu0 0.0
        %422 = vmatpush1.msra.mxu0 0.0
        %423 = vmatprep.subr.mxu0 0.0
        %424 = vmatpush1.msra.mxu0 0.0
        %425 = vmatprep.subr.mxu0 0.0
        %426 = vmatpush1.msra.mxu0 0.0
        %427 = vmatprep.subr.mxu0 0.0
        %428 = vmatpush1.msra.mxu0 0.0
        %429 = vmatprep.subr.mxu0 0.0
        %430 = vmatpush1.msra.mxu0 0.0
        %431 = vmatprep.subr.mxu0 0.0
        %432 = vmatpush1.msra.mxu0 0.0
        %433 = vmatprep.subr.mxu0 0.0
        %434 = vmatpush1.msra.mxu0 0.0
        %435 = vmatprep.subr.mxu0 0.0
        %436 = vmatpush1.msra.mxu0 0.0
        %437 = vmatprep.subr.mxu0 0.0
        %438 = vmatpush1.msra.mxu0 0.0
        %439 = vmatprep.subr.mxu0 0.0
        %440 = vmatpush1.msra.mxu0 0.0
        %441 = vmatprep.subr.mxu0 0.0
        %442 = vmatpush1.msra.mxu0 0.0
        %443 = vmatprep.subr.mxu0 0.0
        %444 = vmatpush1.msra.mxu0 0.0
        %445 = vmatprep.subr.mxu0 0.0
        %446 = vmatpush1.msra.mxu0 0.0
        %447 = vmatprep.subr.mxu0 0.0
        %448 = vmatpush1.msra.mxu0 0.0
        %449 = vmatprep.subr.mxu0 0.0
        %450 = vmatpush1.msra.mxu0 0.0
        %451 = vmatprep.mubr.f32.mxu0 0.0
        %452 = vmatmul.mubr.f32.gmra.mrb[0].mxu0 %v339
        %v453 = vpop.f32.mrb[0].mxu0
        %v454 = vadd.f32 0.0, %v453
        %v455 = vpop.f32.mrb[0].mxu0
        %v456 = vadd.f32 0.0, %v455
        %457 = vmatprep.mubr.f32.mxu0 0.0
        %458 = vmatmul.mubr.f32.gmra.mrb[0].mxu0 %v340
        %v459 = vpop.f32.mrb[0].mxu0
        %v460 = vadd.f32 0.0, %v459
        %v461 = vpop.f32.mrb[0].mxu0
        %v462 = vadd.f32 0.0, %v461
        %463 = vmatprep.mubr.f32.mxu0 0.0
        %464 = vmatmul.mubr.f32.gmra.mrb[0].mxu0 %v341
        %v465 = vpop.f32.mrb[0].mxu0
        %v466 = vadd.f32 0.0, %v465
        %v467 = vpop.f32.mrb[0].mxu0
        %v468 = vadd.f32 0.0, %v467
        %469 = vmatprep.mubr.f32.mxu0 0.0
        %470 = vmatmul.mubr.f32.gmra.mrb[0].mxu0 %v342
        %v471 = vpop.f32.mrb[0].mxu0
        %v472 = vadd.f32 0.0, %v471
        %v473 = vpop.f32.mrb[0].mxu0
        %v474 = vadd.f32 0.0, %v473
        %475 = vmatprep.mubr.f32.mxu0 0.0
        %476 = vmatmul.mubr.f32.gmra.mrb[0].mxu0 %v343
        %v477 = vpop.f32.mrb[0].mxu0
        %v478 = vadd.f32 0.0, %v477
        %v479 = vpop.f32.mrb[0].mxu0
        %v480 = vadd.f32 0.0, %v479
        %481 = vmatprep.mubr.f32.mxu0 0.0
        %482 = vmatmul.mubr.f32.gmra.mrb[0].mxu0 %v344
        %v483 = vpop.f32.mrb[0].mxu0
        %v484 = vadd.f32 0.0, %v483
        %v485 = vpop.f32.mrb[0].mxu0
        %v486 = vadd.f32 0.0, %v485
        %487 = vmatprep.mubr.f32.mxu0 0.0
        %488 = vmatmul.mubr.f32.gmra.mrb[0].mxu0 %v345
        %v489 = vpop.f32.mrb[0].mxu0
        %v490 = vadd.f32 0.0, %v489
        %v491 = vpop.f32.mrb[0].mxu0
        %v492 = vadd.f32 0.0, %v491
        %493 = vmatprep.mubr.f32.mxu0 0.0
        %494 = vmatmul.mubr.f32.gmra.mrb[0].mxu0 %v346
        %v495 = vpop.f32.mrb[0].mxu0
        %v496 = vadd.f32 0.0, %v495
        %v497 = vpop.f32.mrb[0].mxu0
        %v498 = vadd.f32 0.0, %v497
        %499 = vmatprep.mubr.f32.mxu0 0.0
        %500 = vmatmul.mubr.f32.gmra.mrb[0].mxu0 %v347
        %v501 = vpop.f32.mrb[0].mxu0
        %v502 = vadd.f32 0.0, %v501
        %v503 = vpop.f32.mrb[0].mxu0
        %v504 = vadd.f32 0.0, %v503
        %505 = vmatprep.mubr.f32.mxu0 0.0
        %506 = vmatmul.mubr.f32.gmra.mrb[0].mxu0 %v348
        %v507 = vpop.f32.mrb[0].mxu0
        %v508 = vadd.f32 0.0, %v507
        %v509 = vpop.f32.mrb[0].mxu0
        %v510 = vadd.f32 0.0, %v509
        %511 = vmatprep.mubr.f32.mxu0 0.0
        %512 = vmatmul.mubr.f32.gmra.mrb[0].mxu0 %v349
        %v513 = vpop.f32.mrb[0].mxu0
        %v514 = vadd.f32 0.0, %v513
        %v515 = vpop.f32.mrb[0].mxu0
        %v516 = vadd.f32 0.0, %v515
        %517 = vmatprep.mubr.f32.mxu0 0.0
        %518 = vmatmul.mubr.f32.gmra.mrb[0].mxu0 %v350
        %v519 = vpop.f32.mrb[0].mxu0
        %v520 = vadd.f32 0.0, %v519
        %v521 = vpop.f32.mrb[0].mxu0
        %v522 = vadd.f32 0.0, %v521
        %523 = vmatprep.mubr.f32.mxu0 0.0
        %524 = vmatmul.mubr.f32.gmra.mrb[0].mxu0 %v351
        %v525 = vpop.f32.mrb[0].mxu0
        %v526 = vadd.f32 0.0, %v525
        %v527 = vpop.f32.mrb[0].mxu0
        %v528 = vadd.f32 0.0, %v527
        %529 = vmatprep.mubr.f32.mxu0 0.0
        %530 = vmatmul.mubr.f32.gmra.mrb[0].mxu0 %v352
        %v531 = vpop.f32.mrb[0].mxu0
        %v532 = vadd.f32 0.0, %v531
        %v533 = vpop.f32.mrb[0].mxu0
        %v534 = vadd.f32 0.0, %v533
        %535 = vmatprep.mubr.f32.mxu0 0.0
        %536 = vmatmul.mubr.f32.gmra.mrb[0].mxu0 %v353
        %v537 = vpop.f32.mrb[0].mxu0
        %v538 = vadd.f32 0.0, %v537
        %v539 = vpop.f32.mrb[0].mxu0
        %v540 = vadd.f32 0.0, %v539
        %541 = vmatprep.mubr.f32.mxu0 0.0
        %542 = vmatmul.mubr.f32.gmra.mrb[0].mxu0 %v354
        %v543 = vpop.f32.mrb[0].mxu0
        %v544 = vadd.f32 0.0, %v543
        %v545 = vpop.f32.mrb[0].mxu0
        %v546 = vadd.f32 0.0, %v545
        %547 = vdwg.mxu0
        %549 = vset.pattern.permute.xlu0 0
        %550 = vperm.xlu0 %549, %v323
        %v551 = vpop.permute.xlu0 %550
        %554 = vset.pattern.permute.xlu0 0
        %555 = vperm.xlu0 %554, %v324
        %v556 = vpop.permute.xlu0 %555
        %559 = vset.pattern.permute.xlu0 0
        %560 = vperm.xlu0 %559, %v325
        %v561 = vpop.permute.xlu0 %560
        %564 = vset.pattern.permute.xlu0 0
        %565 = vperm.xlu0 %564, %v326
        %v566 = vpop.permute.xlu0 %565
        %569 = vset.pattern.permute.xlu0 0
        %570 = vperm.xlu0 %569, %v327
        %v571 = vpop.permute.xlu0 %570
        %574 = vset.pattern.permute.xlu0 0
        %575 = vperm.xlu0 %574, %v328
        %v576 = vpop.permute.xlu0 %575
        %579 = vset.pattern.permute.xlu0 0
        %580 = vperm.xlu0 %579, %v329
        %v581 = vpop.permute.xlu0 %580
        %584 = vset.pattern.permute.xlu0 0
        %585 = vperm.xlu0 %584, %v330
        %v586 = vpop.permute.xlu0 %585
        %589 = vset.pattern.permute.xlu0 0
        %590 = vperm.xlu0 %589, %v331
        %v591 = vpop.permute.xlu0 %590
        %594 = vset.pattern.permute.xlu0 0
        %595 = vperm.xlu0 %594, %v332
        %v596 = vpop.permute.xlu0 %595
        %599 = vset.pattern.permute.xlu0 0
        %600 = vperm.xlu0 %599, %v333
        %v601 = vpop.permute.xlu0 %600
        %604 = vset.pattern.permute.xlu0 0
        %605 = vperm.xlu0 %604, %v334
        %v606 = vpop.permute.xlu0 %605
        %609 = vset.pattern.permute.xlu0 0
        %610 = vperm.xlu0 %609, %v335
        %v611 = vpop.permute.xlu0 %610
        %614 = vset.pattern.permute.xlu0 0
        %615 = vperm.xlu0 %614, %v336
        %v616 = vpop.permute.xlu0 %615
        %619 = vset.pattern.permute.xlu0 0
        %620 = vperm.xlu0 %619, %v337
        %v621 = vpop.permute.xlu0 %620
        %624 = vset.pattern.permute.xlu0 0
        %625 = vperm.xlu0 %624, %v338
        %v626 = vpop.permute.xlu0 %625
        %v628 = vmul.f32 %v551, %v454
        %v629 = vmul.f32 %v551, %v456
        %v630 = vmul.f32 %v556, %v460
        %v631 = vmul.f32 %v556, %v462
        %v632 = vmul.f32 %v561, %v466
        %v633 = vmul.f32 %v561, %v468
        %v634 = vmul.f32 %v566, %v472
        %v635 = vmul.f32 %v566, %v474
        %v636 = vmul.f32 %v571, %v478
        %v637 = vmul.f32 %v571, %v480
        %v638 = vmul.f32 %v576, %v484
        %v639 = vmul.f32 %v576, %v486
        %v640 = vmul.f32 %v581, %v490
        %v641 = vmul.f32 %v581, %v492
        %v642 = vmul.f32 %v586, %v496
        %v643 = vmul.f32 %v586, %v498
        %v644 = vmul.f32 %v591, %v502
        %v645 = vmul.f32 %v591, %v504
        %v646 = vmul.f32 %v596, %v508
        %v647 = vmul.f32 %v596, %v510
        %v648 = vmul.f32 %v601, %v514
        %v649 = vmul.f32 %v601, %v516
        %v650 = vmul.f32 %v606, %v520
        %v651 = vmul.f32 %v606, %v522
        %v652 = vmul.f32 %v611, %v526
        %v653 = vmul.f32 %v611, %v528
        %v654 = vmul.f32 %v616, %v532
        %v655 = vmul.f32 %v616, %v534
        %v656 = vmul.f32 %v621, %v538
        %v657 = vmul.f32 %v621, %v540
        %v658 = vmul.f32 %v626, %v544
        %v659 = vmul.f32 %v626, %v546
        %v660 = vld [vmem:[%s226] sm:$0xff]
        %v661 = vld [vmem:[%s226 + $0x8] sm:$0xff]
        %v662 = vld [vmem:[%s226 + $0x10] sm:$0xff]
        %v663 = vld [vmem:[%s226 + $0x18] sm:$0xff]
        %v664 = vld [vmem:[%s226 + $0x20] sm:$0xff]
        %v665 = vld [vmem:[%s226 + $0x28] sm:$0xff]
        %v666 = vld [vmem:[%s226 + $0x30] sm:$0xff]
        %v667 = vld [vmem:[%s226 + $0x38] sm:$0xff]
        %v668 = vld [vmem:[%s226 + $0x40] sm:$0xff]
        %v669 = vld [vmem:[%s226 + $0x48] sm:$0xff]
        %v670 = vld [vmem:[%s226 + $0x50] sm:$0xff]
        %v671 = vld [vmem:[%s226 + $0x58] sm:$0xff]
        %v672 = vld [vmem:[%s226 + $0x60] sm:$0xff]
        %v673 = vld [vmem:[%s226 + $0x68] sm:$0xff]
        %v674 = vld [vmem:[%s226 + $0x70] sm:$0xff]
        %v675 = vld [vmem:[%s226 + $0x78] sm:$0xff]
        %v676 = vld [vmem:[%s226 + $0x80] sm:$0xff]
        %v677 = vld [vmem:[%s226 + $0x88] sm:$0xff]
        %v678 = vld [vmem:[%s226 + $0x90] sm:$0xff]
        %v679 = vld [vmem:[%s226 + $0x98] sm:$0xff]
        %v680 = vld [vmem:[%s226 + $0xa0] sm:$0xff]
        %v681 = vld [vmem:[%s226 + $0xa8] sm:$0xff]
        %v682 = vld [vmem:[%s226 + $0xb0] sm:$0xff]
        %v683 = vld [vmem:[%s226 + $0xb8] sm:$0xff]
        %v684 = vld [vmem:[%s226 + $0xc0] sm:$0xff]
        %v685 = vld [vmem:[%s226 + $0xc8] sm:$0xff]
        %v686 = vld [vmem:[%s226 + $0xd0] sm:$0xff]
        %v687 = vld [vmem:[%s226 + $0xd8] sm:$0xff]
        %v688 = vld [vmem:[%s226 + $0xe0] sm:$0xff]
        %v689 = vld [vmem:[%s226 + $0xe8] sm:$0xff]
        %v690 = vld [vmem:[%s226 + $0xf0] sm:$0xff]
        %v691 = vld [vmem:[%s226 + $0xf8] sm:$0xff]
        %v692 = vadd.f32 %v628, %v660
        %v693 = vadd.f32 %v629, %v661
        %v694 = vadd.f32 %v630, %v662
        %v695 = vadd.f32 %v631, %v663
        %v696 = vadd.f32 %v632, %v664
        %v697 = vadd.f32 %v633, %v665
        %v698 = vadd.f32 %v634, %v666
        %v699 = vadd.f32 %v635, %v667
        %v700 = vadd.f32 %v636, %v668
        %v701 = vadd.f32 %v637, %v669
        %v702 = vadd.f32 %v638, %v670
        %v703 = vadd.f32 %v639, %v671
        %v704 = vadd.f32 %v640, %v672
        %v705 = vadd.f32 %v641, %v673
        %v706 = vadd.f32 %v642, %v674
        %v707 = vadd.f32 %v643, %v675
        %v708 = vadd.f32 %v644, %v676
        %v709 = vadd.f32 %v645, %v677
        %v710 = vadd.f32 %v646, %v678
        %v711 = vadd.f32 %v647, %v679
        %v712 = vadd.f32 %v648, %v680
        %v713 = vadd.f32 %v649, %v681
        %v714 = vadd.f32 %v650, %v682
        %v715 = vadd.f32 %v651, %v683
        %v716 = vadd.f32 %v652, %v684
        %v717 = vadd.f32 %v653, %v685
        %v718 = vadd.f32 %v654, %v686
        %v719 = vadd.f32 %v655, %v687
        %v720 = vadd.f32 %v656, %v688
        %v721 = vadd.f32 %v657, %v689
        %v722 = vadd.f32 %v658, %v690
        %v723 = vadd.f32 %v659, %v691
        %724 = vst [vmem:[%s255] sm:$0xff] %v692
        %725 = vst [vmem:[%s255 + $0x8] sm:$0xff] %v693
        %726 = vst [vmem:[%s255 + $0x10] sm:$0xff] %v694
        %727 = vst [vmem:[%s255 + $0x18] sm:$0xff] %v695
        %728 = vst [vmem:[%s255 + $0x20] sm:$0xff] %v696
        %729 = vst [vmem:[%s255 + $0x28] sm:$0xff] %v697
        %730 = vst [vmem:[%s255 + $0x30] sm:$0xff] %v698
        %731 = vst [vmem:[%s255 + $0x38] sm:$0xff] %v699
        %732 = vst [vmem:[%s255 + $0x40] sm:$0xff] %v700
        %733 = vst [vmem:[%s255 + $0x48] sm:$0xff] %v701
        %734 = vst [vmem:[%s255 + $0x50] sm:$0xff] %v702
        %735 = vst [vmem:[%s255 + $0x58] sm:$0xff] %v703
        %736 = vst [vmem:[%s255 + $0x60] sm:$0xff] %v704
        %737 = vst [vmem:[%s255 + $0x68] sm:$0xff] %v705
        %738 = vst [vmem:[%s255 + $0x70] sm:$0xff] %v706
        %739 = vst [vmem:[%s255 + $0x78] sm:$0xff] %v707
        %740 = vst [vmem:[%s255 + $0x80] sm:$0xff] %v708
        %741 = vst [vmem:[%s255 + $0x88] sm:$0xff] %v709
        %742 = vst [vmem:[%s255 + $0x90] sm:$0xff] %v710
        %743 = vst [vmem:[%s255 + $0x98] sm:$0xff] %v711
        %744 = vst [vmem:[%s255 + $0xa0] sm:$0xff] %v712
        %745 = vst [vmem:[%s255 + $0xa8] sm:$0xff] %v713
        %746 = vst [vmem:[%s255 + $0xb0] sm:$0xff] %v714
        %747 = vst [vmem:[%s255 + $0xb8] sm:$0xff] %v715
        %748 = vst [vmem:[%s255 + $0xc0] sm:$0xff] %v716
        %749 = vst [vmem:[%s255 + $0xc8] sm:$0xff] %v717
        %750 = vst [vmem:[%s255 + $0xd0] sm:$0xff] %v718
        %751 = vst [vmem:[%s255 + $0xd8] sm:$0xff] %v719
        %752 = vst [vmem:[%s255 + $0xe0] sm:$0xff] %v720
        %753 = vst [vmem:[%s255 + $0xe8] sm:$0xff] %v721
        %754 = vst [vmem:[%s255 + $0xf0] sm:$0xff] %v722
        %755 = vst [vmem:[%s255 + $0xf8] sm:$0xff] %v723
        %s756 = sand.u32 %s126, 1
        %s757 = scalar_lea.sflag [#allocation4], %s756
        %s758 = sand.u32 %s126, 1
        %s759 = smul.addr %s758, 256
        %s760 = scalar_lea.vmem [#allocation7], %s759
        // Predicated region
        $region45: #{tpu_custom_call.1} parent=35 // pred_check
          %p761 = pneg %p136
        $region46: #{tpu_custom_call.1} parent=35 // pred_check_branch
          %763 = sbr.rel (%p761) target = $region48
        $region47: #{tpu_custom_call.1} parent=35 // pred_region
          %s764 = smul.u32 2, %s24
          %s766 = ssub.s32 4096, 4096
          %767 = vsyncadd %s757, %s766
          %s768 = smul.addr %s764, 128
          %s769 = scalar_lea.hbm %s4, %s768
          %s770 = sshll.u32 %s760, 4
          %s771 = int_to_ptr.vmem [resolvable:$true] %s770
          %776 = dma.vmem_to_hbm [thread:$0]  %s771, 4096, %s769, %s757, 256, 512, 16
        $region48: #{tpu_custom_call.1} parent=35 // pred_fallthru
          _
      $region36: #{tpu_custom_call.1} parent=5 // pred_fallthru
        _
      %p777 = scmp.le.s32.totalorder 2, %s19
      // Predicated region
      $region49: #{tpu_custom_call.1} parent=5 // pred_check
        %p778 = pneg %p777
      $region50: #{tpu_custom_call.1} parent=5 // pred_check_branch
        %780 = sbr.rel (%p778) target = $region52
      $region51: #{tpu_custom_call.1} parent=5 // pred_region
        %s781 = ssub.s32 %s19, 2
        // Predicated region
        $region53: #{tpu_custom_call.1} parent=51 // pred_check
          %p782 = pneg %p142
        $region54: #{tpu_custom_call.1} parent=51 // pred_check_branch
          %784 = sbr.rel (%p782) target = $region56
        $region55: #{tpu_custom_call.1} parent=51 // pred_region
          %s785 = sand.u32 %s127, 1
          %s786 = scalar_lea.sflag [#allocation4], %s785
          %s787 = sand.u32 %s127, 1
          %s788 = smul.addr %s787, 256
          %s789 = scalar_lea.vmem [#allocation7], %s788
          %790 = dma.done %s786, 4096
        $region56: #{tpu_custom_call.1} parent=51 // pred_fallthru
          _
      $region52: #{tpu_custom_call.1} parent=5 // pred_fallthru
        _
    $region6: #{tpu_custom_call.1} parent=1 // loop_footer
      %s23 = sadd.s32 1, %s19
    $region7: #{tpu_custom_call.1} parent=1 // loop_footer_branch
      %18 = sbr.rel target = $region3
    $region8: #{tpu_custom_call.1} parent=1 // loop_exit
      _
    %791 = vsyncpa [#allocation3], 1
    %s792 = scalar_lea.sflag [#allocation3], 1
    %793 = vsyncpa %s792, 1
    %794 = vsyncpa [#allocation6], 1
    %s795 = scalar_lea.sflag [#allocation6], 1
    %796 = vsyncpa %s795, 1
    %797 = vsyncpa [#allocation4], 1
    %s798 = scalar_lea.sflag [#allocation4], 1
    %799 = vsyncpa %s798, 1

</llo_original>
